<compile_context>
chip_gen: v6e
topology: v6e:2x2x1
jax: 0.10.0
libtpu: 0.0.40
codegen_flags: <defaults>
</compile_context>

<pallas_src>
import functools

import jax
import jax.numpy as jnp
import numpy as np
from jax.experimental import pallas as pl
from jax.experimental.pallas import tpu as pltpu


def attention_head_kernel(q_ref, k_ref, v_ref,
                          wq_ref, bq_ref,
                          wk_ref, bk_ref,
                          wv_ref, bv_ref,
                          o_ref, *, batch, seq_q, seq_k, inv_scale, compute_dtype):
    # --- Projections: (B*S, Din) @ (Din, Dqkv) on the MXU.
    # Weights arrive pre-transposed from the wrapper, so the MXU consumes them
    # directly (no in-kernel transpose / XLU work).  Biases stay f32 and are
    # added to the f32 accumulators.
    gq = jnp.dot(q_ref[...], wq_ref[...],
                 preferred_element_type=jnp.float32) + bq_ref[...]   # (B*Sq, Dqkv)
    gk = jnp.dot(k_ref[...], wk_ref[...],
                 preferred_element_type=jnp.float32) + bk_ref[...]   # (B*Sk, Dqkv)
    gv = jnp.dot(v_ref[...], wv_ref[...],
                 preferred_element_type=jnp.float32) + bv_ref[...]   # (B*Sk, Dqkv)

    d_qkv = gq.shape[-1]

    # Fold 1/sqrt(d_qkv) into the small Q projection instead of dividing the
    # (Sq, Sk) score matrix on the VPU.
    gq = gq * jnp.float32(inv_scale)

    # Un-flatten the batch dim (sublane split only, lane dim untouched — cheap),
    # and cast MXU operands to the compute dtype (bf16 on v6e/v7x fast path).
    gq = gq.reshape(batch, seq_q, d_qkv).astype(compute_dtype)
    gk = gk.reshape(batch, seq_k, d_qkv).astype(compute_dtype)
    gv = gv.reshape(batch, seq_k, d_qkv).astype(compute_dtype)

    # QK^T: contract the last dim of both operands directly — no materialized
    # transpose through the XLU before the MXU push.
    scores = jnp.einsum("bqd,bkd->bqk", gq, gk,
                        preferred_element_type=jnp.float32)          # (B, Sq, Sk)

    # Softmax in f32 (exp on the EUP; normalization via approximate EUP
    # reciprocal instead of an exact VPU divide).
    scores = scores - jnp.max(scores, axis=-1, keepdims=True)
    p = jnp.exp(scores)
    p = p * pl.reciprocal(jnp.sum(p, axis=-1, keepdims=True), approx=True)

    # PV matmul, again contracting in the MXU's natural layout.
    out = jnp.einsum("bqk,bkd->bqd", p.astype(compute_dtype), gv,
                     preferred_element_type=jnp.float32)             # (B, Sq, Dqkv)

    o_ref[...] = out.astype(o_ref.dtype)


def attention_head(query, key, value, wq, bq, wk, bk, wv, bv, *, use_bf16_mxu=False):
    B, Sq, Din = query.shape
    _, Sk, _ = key.shape
    Dqkv = wq.shape[0]

    compute_dtype = jnp.bfloat16 if use_bf16_mxu else jnp.float32

    # Layout plumbing on the XLA side (free, not hot-path compute):
    #   * fold batch into the sublane dim for the projection matmuls,
    #   * pre-transpose weights to (Din, Dqkv),
    #   * make biases 2-D VMEM tiles,
    #   * optionally cast MXU operands to bf16 (also halves HBM traffic).
    q2 = query.reshape(B * Sq, Din).astype(compute_dtype)
    k2 = key.reshape(B * Sk, Din).astype(compute_dtype)
    v2 = value.reshape(B * Sk, Din).astype(compute_dtype)
    wq_t = wq.T.astype(compute_dtype)
    wk_t = wk.T.astype(compute_dtype)
    wv_t = wv.T.astype(compute_dtype)
    bq2 = bq.reshape(1, Dqkv).astype(jnp.float32)
    bk2 = bk.reshape(1, Dqkv).astype(jnp.float32)
    bv2 = bv.reshape(1, Dqkv).astype(jnp.float32)

    kernel = functools.partial(
        attention_head_kernel,
        batch=B, seq_q=Sq, seq_k=Sk,
        inv_scale=1.0 / (float(Dqkv) ** 0.5),
        compute_dtype=compute_dtype,
    )

    vmem = pltpu.MemorySpace.VMEM
    return pl.pallas_call(
        kernel,
        out_shape=jax.ShapeDtypeStruct((B, Sq, Dqkv), jnp.float32),
        # Grid-less single invocation: every operand fits whole in VMEM and the
        # per-grid-step pipeline overhead would dominate this tiny workload.
        in_specs=[pl.BlockSpec(memory_space=vmem) for _ in range(9)],
        out_specs=pl.BlockSpec(memory_space=vmem),
    )(q2, k2, v2, wq_t, bq2, wk_t, bk2, wv_t, bv2)


def reference(query, key, value, wq, bq, wk, bk, wv, bv):
    gq = query @ wq.T + bq
    gk = key @ wk.T + bk
    gv = value @ wv.T + bv
    scale = gq.shape[-1] ** 0.5
    s = jnp.einsum("bqd,bkd->bqk", gq, gk) / scale
    p = jax.nn.softmax(s, axis=2)
    return jnp.einsum("bqk,bkd->bqd", p, gv)


if __name__ == "__main__":
    B, S, DIM_IN, DIM_QKV = 2, 8, 32, 16

    key0 = jax.random.PRNGKey(0)
    ks = jax.random.split(key0, 9)

    query = jax.random.normal(ks[0], (B, S, DIM_IN), dtype=jnp.float32)
    key_in = jax.random.normal(ks[1], (B, S, DIM_IN), dtype=jnp.float32)
    value = jax.random.normal(ks[2], (B, S, DIM_IN), dtype=jnp.float32)

    # Deterministic parameter init (PyTorch nn.Linear shapes: W=(out,in), b=(out,)).
    lim = 1.0 / np.sqrt(DIM_IN)
    wq = jax.random.uniform(ks[3], (DIM_QKV, DIM_IN), jnp.float32, -lim, lim)
    bq = jax.random.uniform(ks[4], (DIM_QKV,), jnp.float32, -lim, lim)
    wk = jax.random.uniform(ks[5], (DIM_QKV, DIM_IN), jnp.float32, -lim, lim)
    bk = jax.random.uniform(ks[6], (DIM_QKV,), jnp.float32, -lim, lim)
    wv = jax.random.uniform(ks[7], (DIM_QKV, DIM_IN), jnp.float32, -lim, lim)
    bv = jax.random.uniform(ks[8], (DIM_QKV,), jnp.float32, -lim, lim)

    ref = reference(query, key_in, value, wq, bq, wk, bk, wv, bv)

    # f32-operand path (matches the module's default precision; only the softmax
    # normalization uses the approximate EUP reciprocal).
    out_f32 = jax.block_until_ready(
        attention_head(query, key_in, value, wq, bq, wk, bk, wv, bv,
                       use_bf16_mxu=False))
    np.testing.assert_allclose(np.asarray(out_f32), np.asarray(ref),
                               rtol=5e-3, atol=5e-3)

    # bf16-MXU / f32-accumulate fast path (v6e / v7x throughput lever).
    out_bf16 = jax.block_until_ready(
        attention_head(query, key_in, value, wq, bq, wk, bk, wv, bv,
                       use_bf16_mxu=True))
    np.testing.assert_allclose(np.asarray(out_bf16), np.asarray(ref),
                               rtol=5e-2, atol=5e-2)

    print("KERNEL_OK")
</pallas_src>

<mosaic_0001>
module attributes {stable_mosaic.version = 11 : i64} {
  func.func @attention_head_kernel(%arg0: memref<16x32xf32, #tpu.memory_space<vmem>>, %arg1: memref<16x32xf32, #tpu.memory_space<vmem>>, %arg2: memref<16x32xf32, #tpu.memory_space<vmem>>, %arg3: memref<32x16xf32, #tpu.memory_space<vmem>>, %arg4: memref<1x16xf32, #tpu.memory_space<vmem>>, %arg5: memref<32x16xf32, #tpu.memory_space<vmem>>, %arg6: memref<1x16xf32, #tpu.memory_space<vmem>>, %arg7: memref<32x16xf32, #tpu.memory_space<vmem>>, %arg8: memref<1x16xf32, #tpu.memory_space<vmem>>, %arg9: memref<2x8x16xf32, #tpu.memory_space<vmem>>) attributes {dimension_semantics = [], scalar_prefetch = 0 : i64, scratch_operands = 0 : i64, tpu.core_type = #tpu.core_type<tc>} {
    %c0 = arith.constant 0 : index
    %c0_0 = arith.constant 0 : index
    %0 = vector.load %arg0[%c0, %c0_0] : memref<16x32xf32, #tpu.memory_space<vmem>>, vector<16x32xf32>
    %c0_1 = arith.constant 0 : index
    %c0_2 = arith.constant 0 : index
    %1 = vector.load %arg3[%c0_1, %c0_2] : memref<32x16xf32, #tpu.memory_space<vmem>>, vector<32x16xf32>
    %cst = arith.constant dense<0.000000e+00> : vector<16x16xf32>
    %2 = tpu.matmul %0, %1, %cst {dimension_numbers = #tpu.dot_dimension_numbers<[1], [0], [0], [1], [0, 0, 1, 1], [], []>} : vector<16x32xf32>, vector<32x16xf32>, vector<16x16xf32> -> vector<16x16xf32>
    %c0_3 = arith.constant 0 : index
    %c0_4 = arith.constant 0 : index
    %3 = vector.load %arg4[%c0_3, %c0_4] : memref<1x16xf32, #tpu.memory_space<vmem>>, vector<1x16xf32>
    %4 = vector.broadcast %3 : vector<1x16xf32> to vector<16x16xf32>
    %5 = arith.addf %2, %4 : vector<16x16xf32>
    %c0_5 = arith.constant 0 : index
    %c0_6 = arith.constant 0 : index
    %6 = vector.load %arg1[%c0_5, %c0_6] : memref<16x32xf32, #tpu.memory_space<vmem>>, vector<16x32xf32>
    %c0_7 = arith.constant 0 : index
    %c0_8 = arith.constant 0 : index
    %7 = vector.load %arg5[%c0_7, %c0_8] : memref<32x16xf32, #tpu.memory_space<vmem>>, vector<32x16xf32>
    %cst_9 = arith.constant dense<0.000000e+00> : vector<16x16xf32>
    %8 = tpu.matmul %6, %7, %cst_9 {dimension_numbers = #tpu.dot_dimension_numbers<[1], [0], [0], [1], [0, 0, 1, 1], [], []>} : vector<16x32xf32>, vector<32x16xf32>, vector<16x16xf32> -> vector<16x16xf32>
    %c0_10 = arith.constant 0 : index
    %c0_11 = arith.constant 0 : index
    %9 = vector.load %arg6[%c0_10, %c0_11] : memref<1x16xf32, #tpu.memory_space<vmem>>, vector<1x16xf32>
    %10 = vector.broadcast %9 : vector<1x16xf32> to vector<16x16xf32>
    %11 = arith.addf %8, %10 : vector<16x16xf32>
    %c0_12 = arith.constant 0 : index
    %c0_13 = arith.constant 0 : index
    %12 = vector.load %arg2[%c0_12, %c0_13] : memref<16x32xf32, #tpu.memory_space<vmem>>, vector<16x32xf32>
    %c0_14 = arith.constant 0 : index
    %c0_15 = arith.constant 0 : index
    %13 = vector.load %arg7[%c0_14, %c0_15] : memref<32x16xf32, #tpu.memory_space<vmem>>, vector<32x16xf32>
    %cst_16 = arith.constant dense<0.000000e+00> : vector<16x16xf32>
    %14 = tpu.matmul %12, %13, %cst_16 {dimension_numbers = #tpu.dot_dimension_numbers<[1], [0], [0], [1], [0, 0, 1, 1], [], []>} : vector<16x32xf32>, vector<32x16xf32>, vector<16x16xf32> -> vector<16x16xf32>
    %c0_17 = arith.constant 0 : index
    %c0_18 = arith.constant 0 : index
    %15 = vector.load %arg8[%c0_17, %c0_18] : memref<1x16xf32, #tpu.memory_space<vmem>>, vector<1x16xf32>
    %16 = vector.broadcast %15 : vector<1x16xf32> to vector<16x16xf32>
    %17 = arith.addf %14, %16 : vector<16x16xf32>
    %cst_19 = arith.constant 2.500000e-01 : f32
    %18 = vector.broadcast %cst_19 : f32 to vector<16x16xf32>
    %19 = arith.mulf %5, %18 : vector<16x16xf32>
    %20 = vector.shape_cast %19 : vector<16x16xf32> to vector<2x8x16xf32>
    %21 = vector.shape_cast %11 : vector<16x16xf32> to vector<2x8x16xf32>
    %22 = vector.shape_cast %17 : vector<16x16xf32> to vector<2x8x16xf32>
    "tpu.trace_start"() <{level = 10 : i32, message = "bqd,bkd->bqk"}> : () -> ()
    %cst_20 = arith.constant dense<0.000000e+00> : vector<2x8x8xf32>
    %23 = tpu.matmul %20, %21, %cst_20 {dimension_numbers = #tpu.dot_dimension_numbers<[2], [2], [1], [1], [0, 0, 0, 1, 1, 1], [0], [0]>} : vector<2x8x16xf32>, vector<2x8x16xf32>, vector<2x8x8xf32> -> vector<2x8x8xf32>
    "tpu.trace_stop"() : () -> ()
    %cst_21 = arith.constant dense<0xFF800000> : vector<2x8xf32>
    %24 = vector.multi_reduction <maximumf>, %23, %cst_21 [2] : vector<2x8x8xf32> to vector<2x8xf32>
    %25 = vector.shape_cast %24 : vector<2x8xf32> to vector<2x8x1xf32>
    %26 = vector.broadcast %25 : vector<2x8x1xf32> to vector<2x8x8xf32>
    %27 = arith.subf %23, %26 : vector<2x8x8xf32>
    %28 = math.exp %27 : vector<2x8x8xf32>
    %cst_22 = arith.constant dense<0.000000e+00> : vector<2x8xf32>
    %29 = vector.multi_reduction <add>, %28, %cst_22 [2] : vector<2x8x8xf32> to vector<2x8xf32>
    %30 = vector.shape_cast %29 : vector<2x8xf32> to vector<2x8x1xf32>
    %31 = tpu.reciprocal %30 {approx = true} : vector<2x8x1xf32> -> vector<2x8x1xf32>
    %32 = vector.broadcast %31 : vector<2x8x1xf32> to vector<2x8x8xf32>
    %33 = arith.mulf %28, %32 : vector<2x8x8xf32>
    "tpu.trace_start"() <{level = 10 : i32, message = "bqk,bkd->bqd"}> : () -> ()
    %cst_23 = arith.constant dense<0.000000e+00> : vector<2x8x16xf32>
    %34 = tpu.matmul %33, %22, %cst_23 {dimension_numbers = #tpu.dot_dimension_numbers<[2], [1], [1], [2], [0, 0, 0, 1, 1, 2], [0], [0]>} : vector<2x8x8xf32>, vector<2x8x16xf32>, vector<2x8x16xf32> -> vector<2x8x16xf32>
    "tpu.trace_stop"() : () -> ()
    %c0_24 = arith.constant 0 : index
    %c0_25 = arith.constant 0 : index
    %c0_26 = arith.constant 0 : index
    %35 = vector.load %arg9[%c0_24, %c0_25, %c0_26] : memref<2x8x16xf32, #tpu.memory_space<vmem>>, vector<2x8x16xf32>
    tpu.vector_store %arg9[%c0_24, %c0_25, %c0_26], %34 {strides = array<i32>} : memref<2x8x16xf32, #tpu.memory_space<vmem>>, vector<2x8x16xf32>,
    return
  }
}

</mosaic_0001>

<llo_original>
// kernel: tpu_custom_call.1
$region0: #{tpu_custom_call.1}
  #allocation0 [shape = 'u32[]', space=smem, size = 0x4, offset = 0x4, fixed_abs, tag = 'smem constant byte address 0x4 - core index']
  #allocation1 [shape = 'u32[144,128]{1,0:T(1,128)}', space=vmem, size = 0x12000, scoped, tag = 'internal scratch']
  %s0 = inlined_call_operand.vmem [shape: f32[16,32], index: 0, kind: input, shape index: {}]
  %s1 = inlined_call_operand.vmem [shape: f32[16,32], index: 1, kind: input, shape index: {}]
  %s2 = inlined_call_operand.vmem [shape: f32[16,32], index: 2, kind: input, shape index: {}]
  %s3 = inlined_call_operand.vmem [shape: f32[32,16], index: 3, kind: input, shape index: {}]
  %s4 = inlined_call_operand.vmem [shape: f32[1,16], index: 4, kind: input, shape index: {}]
  %s5 = inlined_call_operand.vmem [shape: f32[32,16], index: 5, kind: input, shape index: {}]
  %s6 = inlined_call_operand.vmem [shape: f32[1,16], index: 6, kind: input, shape index: {}]
  %s7 = inlined_call_operand.vmem [shape: f32[32,16], index: 7, kind: input, shape index: {}]
  %s8 = inlined_call_operand.vmem [shape: f32[1,16], index: 8, kind: input, shape index: {}]
  %s9 = inlined_call_operand.hbm [shape: f32[2,8,16], index: 9, kind: output, shape index: {}]
  %s10 = sld [smem:[#allocation0]]
  $region46: #{tpu_custom_call.1} parent=0
    _
  %s12 = ssub.s32 1, %s10
  %s13 = scalar_select 0, %s12, %s10
  $region1: #{tpu_custom_call.1} parent=0
    #allocation2 [shape = 'u8[8192]{0}', space=vmem, size = 0x2000, scoped, tag = 'output window, operand 0, single buffered']
    #allocation3 [shape = 's32[1]{0}', space=sflag, size = 0x4, scoped, tag = 'scoped memory for tpu_custom_call.1']
    %14 = vsyncpa [#allocation3], 0
    // Predicated region
    $region2: #{tpu_custom_call.1} parent=1 // pred_check
      _
    $region3: #{tpu_custom_call.1} parent=1 // pred_check_branch
      %16 = sbr.rel (0) target = $region5
    $region4: #{tpu_custom_call.1} parent=1 // pred_region
      _
    $region5: #{tpu_custom_call.1} parent=1 // pred_fallthru
      _
    // Predicated region
    $region6: #{tpu_custom_call.1} parent=1 // pred_check
      _
    $region7: #{tpu_custom_call.1} parent=1 // pred_check_branch
      %18 = sbr.rel (0) target = $region9
    $region8: #{tpu_custom_call.1} parent=1 // pred_region
      _
    $region9: #{tpu_custom_call.1} parent=1 // pred_fallthru
      _
    // Predicated region
    $region10: #{tpu_custom_call.1} parent=1 // pred_check
      _
    $region11: #{tpu_custom_call.1} parent=1 // pred_check_branch
      %20 = sbr.rel (0) target = $region13
    $region12: #{tpu_custom_call.1} parent=1 // pred_region
      _
    $region13: #{tpu_custom_call.1} parent=1 // pred_fallthru
      _
    // Predicated region
    $region14: #{tpu_custom_call.1} parent=1 // pred_check
      _
    $region15: #{tpu_custom_call.1} parent=1 // pred_check_branch
      %22 = sbr.rel (0) target = $region17
    $region16: #{tpu_custom_call.1} parent=1 // pred_region
      _
    $region17: #{tpu_custom_call.1} parent=1 // pred_fallthru
      _
    // Predicated region
    $region18: #{tpu_custom_call.1} parent=1 // pred_check
      _
    $region19: #{tpu_custom_call.1} parent=1 // pred_check_branch
      %24 = sbr.rel (0) target = $region21
    $region20: #{tpu_custom_call.1} parent=1 // pred_region
      _
    $region21: #{tpu_custom_call.1} parent=1 // pred_fallthru
      _
    // Predicated region
    $region22: #{tpu_custom_call.1} parent=1 // pred_check
      _
    $region23: #{tpu_custom_call.1} parent=1 // pred_check_branch
      %26 = sbr.rel (0) target = $region25
    $region24: #{tpu_custom_call.1} parent=1 // pred_region
      _
    $region25: #{tpu_custom_call.1} parent=1 // pred_fallthru
      _
    // Predicated region
    $region26: #{tpu_custom_call.1} parent=1 // pred_check
      _
    $region27: #{tpu_custom_call.1} parent=1 // pred_check_branch
      %28 = sbr.rel (0) target = $region29
    $region28: #{tpu_custom_call.1} parent=1 // pred_region
      _
    $region29: #{tpu_custom_call.1} parent=1 // pred_fallthru
      _
    // Predicated region
    $region30: #{tpu_custom_call.1} parent=1 // pred_check
      _
    $region31: #{tpu_custom_call.1} parent=1 // pred_check_branch
      %30 = sbr.rel (0) target = $region33
    $region32: #{tpu_custom_call.1} parent=1 // pred_region
      _
    $region33: #{tpu_custom_call.1} parent=1 // pred_fallthru
      _
    // Predicated region
    $region34: #{tpu_custom_call.1} parent=1 // pred_check
      _
    $region35: #{tpu_custom_call.1} parent=1 // pred_check_branch
      %32 = sbr.rel (0) target = $region37
    $region36: #{tpu_custom_call.1} parent=1 // pred_region
      _
    $region37: #{tpu_custom_call.1} parent=1 // pred_fallthru
      _
    %v33 = vld [vmem:[%s0] sm:$0xff]
    %v34 = vld [vmem:[%s0 + $0x8] sm:$0xff]
    %v35 = vld [vmem:[%s3] sm:$0xff]
    %v36 = vld [vmem:[%s3 + $0x8] sm:$0xff]
    %v37 = vld [vmem:[%s3 + $0x10] sm:$0xff]
    %v38 = vld [vmem:[%s3 + $0x18] sm:$0xff]
    %v39 = vld [vmem:[%s4] sm:$0x1]
    %v41 = vlaneseq
    %v42 = vshrl.u32 %v41, 7
    %v43 = vsub.s32 0, %v42
    %v44 = vrot.slane %v39, %v43
    %vm46 = vcmask 261120
    %v48 = vsel %vm46, %v33, 0
    %v51 = vsel %vm46, %v34, 0
    %53 = vmatprep.subr.mxu0 0.0
    %54 = vmatpush1.msra.mxu0 0.0
    %55 = vmatprep.subr.mxu0 0.0
    %56 = vmatpush1.msra.mxu0 0.0
    %57 = vmatprep.subr.mxu0 0.0
    %58 = vmatpush1.msra.mxu0 0.0
    %59 = vmatprep.subr.mxu0 0.0
    %60 = vmatpush1.msra.mxu0 0.0
    %61 = vmatprep.subr.mxu0 0.0
    %62 = vmatpush1.msra.mxu0 0.0
    %63 = vmatprep.subr.mxu0 0.0
    %64 = vmatpush1.msra.mxu0 0.0
    %65 = vmatprep.subr.mxu0 0.0
    %66 = vmatpush1.msra.mxu0 0.0
    %67 = vmatprep.subr.mxu0 0.0
    %68 = vmatpush1.msra.mxu0 0.0
    %69 = vmatprep.subr.mxu0 0.0
    %70 = vmatpush1.msra.mxu0 0.0
    %71 = vmatprep.subr.mxu0 0.0
    %72 = vmatpush1.msra.mxu0 0.0
    %73 = vmatprep.subr.mxu0 0.0
    %74 = vmatpush1.msra.mxu0 0.0
    %75 = vmatprep.subr.mxu0 0.0
    %76 = vmatpush1.msra.mxu0 0.0
    %77 = vmatprep.subr.mxu0 0.0
    %78 = vmatpush1.msra.mxu0 %v38
    %79 = vmatprep.subr.mxu0 0.0
    %80 = vmatpush1.msra.mxu0 %v37
    %81 = vmatprep.subr.mxu0 0.0
    %82 = vmatpush1.msra.mxu0 %v36
    %83 = vmatprep.subr.mxu0 0.0
    %84 = vmatpush1.msra.mxu0 %v35
    %85 = vmatprep.subr.mxu0 0.0
    %86 = vmatpush2.msra.mxu0 0.0
    %87 = vmatprep.subr.mxu0 0.0
    %88 = vmatpush2.msra.mxu0 0.0
    %89 = vmatprep.subr.mxu0 0.0
    %90 = vmatpush2.msra.mxu0 0.0
    %91 = vmatprep.subr.mxu0 0.0
    %92 = vmatpush2.msra.mxu0 0.0
    %93 = vmatprep.subr.mxu0 0.0
    %94 = vmatpush2.msra.mxu0 0.0
    %95 = vmatprep.subr.mxu0 0.0
    %96 = vmatpush2.msra.mxu0 0.0
    %97 = vmatprep.subr.mxu0 0.0
    %98 = vmatpush2.msra.mxu0 0.0
    %99 = vmatprep.subr.mxu0 0.0
    %100 = vmatpush2.msra.mxu0 0.0
    %101 = vmatprep.subr.mxu0 0.0
    %102 = vmatpush2.msra.mxu0 0.0
    %103 = vmatprep.subr.mxu0 0.0
    %104 = vmatpush2.msra.mxu0 0.0
    %105 = vmatprep.subr.mxu0 0.0
    %106 = vmatpush2.msra.mxu0 0.0
    %107 = vmatprep.subr.mxu0 0.0
    %108 = vmatpush2.msra.mxu0 0.0
    %109 = vmatprep.subr.mxu0 0.0
    %110 = vmatpush2.msra.mxu0 0.0
    %111 = vmatprep.subr.mxu0 0.0
    %112 = vmatpush2.msra.mxu0 0.0
    %113 = vmatprep.subr.mxu0 0.0
    %114 = vmatpush2.msra.mxu0 0.0
    %115 = vmatprep.subr.mxu0 0.0
    %116 = vmatpush2.msra.mxu0 0.0
    %117 = vmatprep.mubr.f32.mxu0 0.0
    %118 = vmatmul.mubr.f32.gmra.mxu0 %v48
    %v119 = vpop.f32.mrf.mxu0
    %v120 = vadd.f32 %v44, %v119
    %v121 = vpop.f32.mrf.mxu0
    %122 = vmatprep.mubr.f32.mxu0 0.0
    %123 = vmatmul.mubr.f32.gmra.mxu0 %v51
    %v124 = vpop.f32.mrf.mxu0
    %v125 = vadd.f32 %v44, %v124
    %v126 = vpop.f32.mrf.mxu0
    %127 = vdwg.mxu0
    %v128 = vld [vmem:[%s1] sm:$0xff]
    %v129 = vld [vmem:[%s1 + $0x8] sm:$0xff]
    %v130 = vld [vmem:[%s5] sm:$0xff]
    %v131 = vld [vmem:[%s5 + $0x8] sm:$0xff]
    %v132 = vld [vmem:[%s5 + $0x10] sm:$0xff]
    %v133 = vld [vmem:[%s5 + $0x18] sm:$0xff]
    %v134 = vld [vmem:[%s6] sm:$0x1]
    %v136 = vlaneseq
    %v137 = vshrl.u32 %v136, 7
    %v138 = vsub.s32 0, %v137
    %v139 = vrot.slane %v134, %v138
    %v142 = vsel %vm46, %v128, 0
    %v145 = vsel %vm46, %v129, 0
    %147 = vmatprep.subr.mxu0 0.0
    %148 = vmatpush1.msra.mxu0 0.0
    %149 = vmatprep.subr.mxu0 0.0
    %150 = vmatpush1.msra.mxu0 0.0
    %151 = vmatprep.subr.mxu0 0.0
    %152 = vmatpush1.msra.mxu0 0.0
    %153 = vmatprep.subr.mxu0 0.0
    %154 = vmatpush1.msra.mxu0 0.0
    %155 = vmatprep.subr.mxu0 0.0
    %156 = vmatpush1.msra.mxu0 0.0
    %157 = vmatprep.subr.mxu0 0.0
    %158 = vmatpush1.msra.mxu0 0.0
    %159 = vmatprep.subr.mxu0 0.0
    %160 = vmatpush1.msra.mxu0 0.0
    %161 = vmatprep.subr.mxu0 0.0
    %162 = vmatpush1.msra.mxu0 0.0
    %163 = vmatprep.subr.mxu0 0.0
    %164 = vmatpush1.msra.mxu0 0.0
    %165 = vmatprep.subr.mxu0 0.0
    %166 = vmatpush1.msra.mxu0 0.0
    %167 = vmatprep.subr.mxu0 0.0
    %168 = vmatpush1.msra.mxu0 0.0
    %169 = vmatprep.subr.mxu0 0.0
    %170 = vmatpush1.msra.mxu0 0.0
    %171 = vmatprep.subr.mxu0 0.0
    %172 = vmatpush1.msra.mxu0 %v133
    %173 = vmatprep.subr.mxu0 0.0
    %174 = vmatpush1.msra.mxu0 %v132
    %175 = vmatprep.subr.mxu0 0.0
    %176 = vmatpush1.msra.mxu0 %v131
    %177 = vmatprep.subr.mxu0 0.0
    %178 = vmatpush1.msra.mxu0 %v130
    %179 = vmatprep.subr.mxu0 0.0
    %180 = vmatpush2.msra.mxu0 0.0
    %181 = vmatprep.subr.mxu0 0.0
    %182 = vmatpush2.msra.mxu0 0.0
    %183 = vmatprep.subr.mxu0 0.0
    %184 = vmatpush2.msra.mxu0 0.0
    %185 = vmatprep.subr.mxu0 0.0
    %186 = vmatpush2.msra.mxu0 0.0
    %187 = vmatprep.subr.mxu0 0.0
    %188 = vmatpush2.msra.mxu0 0.0
    %189 = vmatprep.subr.mxu0 0.0
    %190 = vmatpush2.msra.mxu0 0.0
    %191 = vmatprep.subr.mxu0 0.0
    %192 = vmatpush2.msra.mxu0 0.0
    %193 = vmatprep.subr.mxu0 0.0
    %194 = vmatpush2.msra.mxu0 0.0
    %195 = vmatprep.subr.mxu0 0.0
    %196 = vmatpush2.msra.mxu0 0.0
    %197 = vmatprep.subr.mxu0 0.0
    %198 = vmatpush2.msra.mxu0 0.0
    %199 = vmatprep.subr.mxu0 0.0
    %200 = vmatpush2.msra.mxu0 0.0
    %201 = vmatprep.subr.mxu0 0.0
    %202 = vmatpush2.msra.mxu0 0.0
    %203 = vmatprep.subr.mxu0 0.0
    %204 = vmatpush2.msra.mxu0 0.0
    %205 = vmatprep.subr.mxu0 0.0
    %206 = vmatpush2.msra.mxu0 0.0
    %207 = vmatprep.subr.mxu0 0.0
    %208 = vmatpush2.msra.mxu0 0.0
    %209 = vmatprep.subr.mxu0 0.0
    %210 = vmatpush2.msra.mxu0 0.0
    %211 = vmatprep.mubr.f32.mxu0 0.0
    %212 = vmatmul.mubr.f32.gmra.mxu0 %v142
    %v213 = vpop.f32.mrf.mxu0
    %v214 = vadd.f32 %v139, %v213
    %v215 = vpop.f32.mrf.mxu0
    %216 = vmatprep.mubr.f32.mxu0 0.0
    %217 = vmatmul.mubr.f32.gmra.mxu0 %v145
    %v218 = vpop.f32.mrf.mxu0
    %v219 = vadd.f32 %v139, %v218
    %v220 = vpop.f32.mrf.mxu0
    %221 = vdwg.mxu0
    %v222 = vld [vmem:[%s2] sm:$0xff]
    %v223 = vld [vmem:[%s2 + $0x8] sm:$0xff]
    %v224 = vld [vmem:[%s7] sm:$0xff]
    %v225 = vld [vmem:[%s7 + $0x8] sm:$0xff]
    %v226 = vld [vmem:[%s7 + $0x10] sm:$0xff]
    %v227 = vld [vmem:[%s7 + $0x18] sm:$0xff]
    %v228 = vld [vmem:[%s8] sm:$0x1]
    %v230 = vlaneseq
    %v231 = vshrl.u32 %v230, 7
    %v232 = vsub.s32 0, %v231
    %v233 = vrot.slane %v228, %v232
    %v236 = vsel %vm46, %v222, 0
    %v239 = vsel %vm46, %v223, 0
    %241 = vmatprep.subr.mxu0 0.0
    %242 = vmatpush1.msra.mxu0 0.0
    %243 = vmatprep.subr.mxu0 0.0
    %244 = vmatpush1.msra.mxu0 0.0
    %245 = vmatprep.subr.mxu0 0.0
    %246 = vmatpush1.msra.mxu0 0.0
    %247 = vmatprep.subr.mxu0 0.0
    %248 = vmatpush1.msra.mxu0 0.0
    %249 = vmatprep.subr.mxu0 0.0
    %250 = vmatpush1.msra.mxu0 0.0
    %251 = vmatprep.subr.mxu0 0.0
    %252 = vmatpush1.msra.mxu0 0.0
    %253 = vmatprep.subr.mxu0 0.0
    %254 = vmatpush1.msra.mxu0 0.0
    %255 = vmatprep.subr.mxu0 0.0
    %256 = vmatpush1.msra.mxu0 0.0
    %257 = vmatprep.subr.mxu0 0.0
    %258 = vmatpush1.msra.mxu0 0.0
    %259 = vmatprep.subr.mxu0 0.0
    %260 = vmatpush1.msra.mxu0 0.0
    %261 = vmatprep.subr.mxu0 0.0
    %262 = vmatpush1.msra.mxu0 0.0
    %263 = vmatprep.subr.mxu0 0.0
    %264 = vmatpush1.msra.mxu0 0.0
    %265 = vmatprep.subr.mxu0 0.0
    %266 = vmatpush1.msra.mxu0 %v227
    %267 = vmatprep.subr.mxu0 0.0
    %268 = vmatpush1.msra.mxu0 %v226
    %269 = vmatprep.subr.mxu0 0.0
    %270 = vmatpush1.msra.mxu0 %v225
    %271 = vmatprep.subr.mxu0 0.0
    %272 = vmatpush1.msra.mxu0 %v224
    %273 = vmatprep.subr.mxu0 0.0
    %274 = vmatpush2.msra.mxu0 0.0
    %275 = vmatprep.subr.mxu0 0.0
    %276 = vmatpush2.msra.mxu0 0.0
    %277 = vmatprep.subr.mxu0 0.0
    %278 = vmatpush2.msra.mxu0 0.0
    %279 = vmatprep.subr.mxu0 0.0
    %280 = vmatpush2.msra.mxu0 0.0
    %281 = vmatprep.subr.mxu0 0.0
    %282 = vmatpush2.msra.mxu0 0.0
    %283 = vmatprep.subr.mxu0 0.0
    %284 = vmatpush2.msra.mxu0 0.0
    %285 = vmatprep.subr.mxu0 0.0
    %286 = vmatpush2.msra.mxu0 0.0
    %287 = vmatprep.subr.mxu0 0.0
    %288 = vmatpush2.msra.mxu0 0.0
    %289 = vmatprep.subr.mxu0 0.0
    %290 = vmatpush2.msra.mxu0 0.0
    %291 = vmatprep.subr.mxu0 0.0
    %292 = vmatpush2.msra.mxu0 0.0
    %293 = vmatprep.subr.mxu0 0.0
    %294 = vmatpush2.msra.mxu0 0.0
    %295 = vmatprep.subr.mxu0 0.0
    %296 = vmatpush2.msra.mxu0 0.0
    %297 = vmatprep.subr.mxu0 0.0
    %298 = vmatpush2.msra.mxu0 0.0
    %299 = vmatprep.subr.mxu0 0.0
    %300 = vmatpush2.msra.mxu0 0.0
    %301 = vmatprep.subr.mxu0 0.0
    %302 = vmatpush2.msra.mxu0 0.0
    %303 = vmatprep.subr.mxu0 0.0
    %304 = vmatpush2.msra.mxu0 0.0
    %305 = vmatprep.mubr.f32.mxu0 0.0
    %306 = vmatmul.mubr.f32.gmra.mxu0 %v236
    %v307 = vpop.f32.mrf.mxu0
    %v308 = vadd.f32 %v233, %v307
    %v309 = vpop.f32.mrf.mxu0
    %310 = vmatprep.mubr.f32.mxu0 0.0
    %311 = vmatmul.mubr.f32.gmra.mxu0 %v239
    %v312 = vpop.f32.mrf.mxu0
    %v313 = vadd.f32 %v233, %v312
    %v314 = vpop.f32.mrf.mxu0
    %315 = vdwg.mxu0
    %v316 = vmul.f32 %v120, 0.25
    %v317 = vmul.f32 %v125, 0.25
    %vm318 = vcmask 130048
    %v320 = vsel %vm318, %v316, 0
    %v323 = vsel %vm318, %v214, 0
    %325 = vmatprep.subr.mxu0 0.0
    %326 = vmatpush1.xpose.msra.mxu0 0.0
    %327 = vmatprep.subr.mxu0 0.0
    %328 = vmatpush1.xpose.msra.mxu0 0.0
    %329 = vmatprep.subr.mxu0 0.0
    %330 = vmatpush1.xpose.msra.mxu0 0.0
    %331 = vmatprep.subr.mxu0 0.0
    %332 = vmatpush1.xpose.msra.mxu0 0.0
    %333 = vmatprep.subr.mxu0 0.0
    %334 = vmatpush1.xpose.msra.mxu0 0.0
    %335 = vmatprep.subr.mxu0 0.0
    %336 = vmatpush1.xpose.msra.mxu0 0.0
    %337 = vmatprep.subr.mxu0 0.0
    %338 = vmatpush1.xpose.msra.mxu0 0.0
    %339 = vmatprep.subr.mxu0 0.0
    %340 = vmatpush1.xpose.msra.mxu0 0.0
    %341 = vmatprep.subr.mxu0 0.0
    %342 = vmatpush1.xpose.msra.mxu0 0.0
    %343 = vmatprep.subr.mxu0 0.0
    %344 = vmatpush1.xpose.msra.mxu0 0.0
    %345 = vmatprep.subr.mxu0 0.0
    %346 = vmatpush1.xpose.msra.mxu0 0.0
    %347 = vmatprep.subr.mxu0 0.0
    %348 = vmatpush1.xpose.msra.mxu0 0.0
    %349 = vmatprep.subr.mxu0 0.0
    %350 = vmatpush1.xpose.msra.mxu0 0.0
    %351 = vmatprep.subr.mxu0 0.0
    %352 = vmatpush1.xpose.msra.mxu0 0.0
    %353 = vmatprep.subr.mxu0 0.0
    %354 = vmatpush1.xpose.msra.mxu0 0.0
    %355 = vmatprep.subr.mxu0 0.0
    %356 = vmatpush1.xpose.msra.mxu0 %v323
    %357 = vmatprep.subr.mxu0 0.0
    %358 = vmatpush2.xpose.msra.mxu0 0.0
    %359 = vmatprep.subr.mxu0 0.0
    %360 = vmatpush2.xpose.msra.mxu0 0.0
    %361 = vmatprep.subr.mxu0 0.0
    %362 = vmatpush2.xpose.msra.mxu0 0.0
    %363 = vmatprep.subr.mxu0 0.0
    %364 = vmatpush2.xpose.msra.mxu0 0.0
    %365 = vmatprep.subr.mxu0 0.0
    %366 = vmatpush2.xpose.msra.mxu0 0.0
    %367 = vmatprep.subr.mxu0 0.0
    %368 = vmatpush2.xpose.msra.mxu0 0.0
    %369 = vmatprep.subr.mxu0 0.0
    %370 = vmatpush2.xpose.msra.mxu0 0.0
    %371 = vmatprep.subr.mxu0 0.0
    %372 = vmatpush2.xpose.msra.mxu0 0.0
    %373 = vmatprep.subr.mxu0 0.0
    %374 = vmatpush2.xpose.msra.mxu0 0.0
    %375 = vmatprep.subr.mxu0 0.0
    %376 = vmatpush2.xpose.msra.mxu0 0.0
    %377 = vmatprep.subr.mxu0 0.0
    %378 = vmatpush2.xpose.msra.mxu0 0.0
    %379 = vmatprep.subr.mxu0 0.0
    %380 = vmatpush2.xpose.msra.mxu0 0.0
    %381 = vmatprep.subr.mxu0 0.0
    %382 = vmatpush2.xpose.msra.mxu0 0.0
    %383 = vmatprep.subr.mxu0 0.0
    %384 = vmatpush2.xpose.msra.mxu0 0.0
    %385 = vmatprep.subr.mxu0 0.0
    %386 = vmatpush2.xpose.msra.mxu0 0.0
    %387 = vmatprep.subr.mxu0 0.0
    %388 = vmatpush2.xpose.msra.mxu0 0.0
    %389 = vmatprep.mubr.f32.mxu0 0.0
    %390 = vmatmul.mubr.f32.gmra.mxu0 %v320
    %v391 = vpop.f32.mrf.mxu0
    %v392 = vadd.f32 0.0, %v391
    %v393 = vpop.f32.mrf.mxu0
    %394 = vdwg.mxu0
    %v396 = vsel %vm318, %v317, 0
    %v399 = vsel %vm318, %v219, 0
    %401 = vmatprep.subr.mxu0 0.0
    %402 = vmatpush1.xpose.msra.mxu0 0.0
    %403 = vmatprep.subr.mxu0 0.0
    %404 = vmatpush1.xpose.msra.mxu0 0.0
    %405 = vmatprep.subr.mxu0 0.0
    %406 = vmatpush1.xpose.msra.mxu0 0.0
    %407 = vmatprep.subr.mxu0 0.0
    %408 = vmatpush1.xpose.msra.mxu0 0.0
    %409 = vmatprep.subr.mxu0 0.0
    %410 = vmatpush1.xpose.msra.mxu0 0.0
    %411 = vmatprep.subr.mxu0 0.0
    %412 = vmatpush1.xpose.msra.mxu0 0.0
    %413 = vmatprep.subr.mxu0 0.0
    %414 = vmatpush1.xpose.msra.mxu0 0.0
    %415 = vmatprep.subr.mxu0 0.0
    %416 = vmatpush1.xpose.msra.mxu0 0.0
    %417 = vmatprep.subr.mxu0 0.0
    %418 = vmatpush1.xpose.msra.mxu0 0.0
    %419 = vmatprep.subr.mxu0 0.0
    %420 = vmatpush1.xpose.msra.mxu0 0.0
    %421 = vmatprep.subr.mxu0 0.0
    %422 = vmatpush1.xpose.msra.mxu0 0.0
    %423 = vmatprep.subr.mxu0 0.0
    %424 = vmatpush1.xpose.msra.mxu0 0.0
    %425 = vmatprep.subr.mxu0 0.0
    %426 = vmatpush1.xpose.msra.mxu0 0.0
    %427 = vmatprep.subr.mxu0 0.0
    %428 = vmatpush1.xpose.msra.mxu0 0.0
    %429 = vmatprep.subr.mxu0 0.0
    %430 = vmatpush1.xpose.msra.mxu0 0.0
    %431 = vmatprep.subr.mxu0 0.0
    %432 = vmatpush1.xpose.msra.mxu0 %v399
    %433 = vmatprep.subr.mxu0 0.0
    %434 = vmatpush2.xpose.msra.mxu0 0.0
    %435 = vmatprep.subr.mxu0 0.0
    %436 = vmatpush2.xpose.msra.mxu0 0.0
    %437 = vmatprep.subr.mxu0 0.0
    %438 = vmatpush2.xpose.msra.mxu0 0.0
    %439 = vmatprep.subr.mxu0 0.0
    %440 = vmatpush2.xpose.msra.mxu0 0.0
    %441 = vmatprep.subr.mxu0 0.0
    %442 = vmatpush2.xpose.msra.mxu0 0.0
    %443 = vmatprep.subr.mxu0 0.0
    %444 = vmatpush2.xpose.msra.mxu0 0.0
    %445 = vmatprep.subr.mxu0 0.0
    %446 = vmatpush2.xpose.msra.mxu0 0.0
    %447 = vmatprep.subr.mxu0 0.0
    %448 = vmatpush2.xpose.msra.mxu0 0.0
    %449 = vmatprep.subr.mxu0 0.0
    %450 = vmatpush2.xpose.msra.mxu0 0.0
    %451 = vmatprep.subr.mxu0 0.0
    %452 = vmatpush2.xpose.msra.mxu0 0.0
    %453 = vmatprep.subr.mxu0 0.0
    %454 = vmatpush2.xpose.msra.mxu0 0.0
    %455 = vmatprep.subr.mxu0 0.0
    %456 = vmatpush2.xpose.msra.mxu0 0.0
    %457 = vmatprep.subr.mxu0 0.0
    %458 = vmatpush2.xpose.msra.mxu0 0.0
    %459 = vmatprep.subr.mxu0 0.0
    %460 = vmatpush2.xpose.msra.mxu0 0.0
    %461 = vmatprep.subr.mxu0 0.0
    %462 = vmatpush2.xpose.msra.mxu0 0.0
    %463 = vmatprep.subr.mxu0 0.0
    %464 = vmatpush2.xpose.msra.mxu0 0.0
    %465 = vmatprep.mubr.f32.mxu0 0.0
    %466 = vmatmul.mubr.f32.gmra.mxu0 %v396
    %v467 = vpop.f32.mrf.mxu0
    %v468 = vadd.f32 0.0, %v467
    %v469 = vpop.f32.mrf.mxu0
    %470 = vdwg.mxu0
    %vm471 = vcmask 64512
    %v472 = vsel %vm471, %v392, -inf
    %473 = vmax.xlane.f32.xlu0 %v472
    %v474 = vpop.xlane.xlu0 %473
    %v475 = vsel %vm471, %v468, -inf
    %476 = vmax.xlane.f32.xlu0 %v475
    %v477 = vpop.xlane.xlu0 %476
    %v478 = vsub.f32 %v392, %v474
    %v479 = vsub.f32 %v468, %v477
    %v480 = vmul.f32 %v478, 1.442695
    %v481 = vpow.pop %v480
    %v482 = vmul.f32 %v479, 1.442695
    %v483 = vpow.pop %v482
    %v484 = vsel %vm471, %v481, 0.0
    %485 = vadd.xlane.f32.xlu0 %v484
    %v486 = vpop.xlane.xlu0 %485
    %v487 = vsel %vm471, %v483, 0.0
    %488 = vadd.xlane.f32.xlu0 %v487
    %v489 = vpop.xlane.xlu0 %488
    %v490 = vrcp.pop %v486
    %v491 = vrcp.pop %v489
    %v492 = vmul.f32 %v481, %v490
    %v493 = vmul.f32 %v483, %v491
    %v495 = vsel %vm471, %v492, 0
    %497 = vmatprep.subr.mxu0 0.0
    %498 = vmatpush1.msra.mxu0 0.0
    %499 = vmatprep.subr.mxu0 0.0
    %500 = vmatpush1.msra.mxu0 0.0
    %501 = vmatprep.subr.mxu0 0.0
    %502 = vmatpush1.msra.mxu0 0.0
    %503 = vmatprep.subr.mxu0 0.0
    %504 = vmatpush1.msra.mxu0 0.0
    %505 = vmatprep.subr.mxu0 0.0
    %506 = vmatpush1.msra.mxu0 0.0
    %507 = vmatprep.subr.mxu0 0.0
    %508 = vmatpush1.msra.mxu0 0.0
    %509 = vmatprep.subr.mxu0 0.0
    %510 = vmatpush1.msra.mxu0 0.0
    %511 = vmatprep.subr.mxu0 0.0
    %512 = vmatpush1.msra.mxu0 0.0
    %513 = vmatprep.subr.mxu0 0.0
    %514 = vmatpush1.msra.mxu0 0.0
    %515 = vmatprep.subr.mxu0 0.0
    %516 = vmatpush1.msra.mxu0 0.0
    %517 = vmatprep.subr.mxu0 0.0
    %518 = vmatpush1.msra.mxu0 0.0
    %519 = vmatprep.subr.mxu0 0.0
    %520 = vmatpush1.msra.mxu0 0.0
    %521 = vmatprep.subr.mxu0 0.0
    %522 = vmatpush1.msra.mxu0 0.0
    %523 = vmatprep.subr.mxu0 0.0
    %524 = vmatpush1.msra.mxu0 0.0
    %525 = vmatprep.subr.mxu0 0.0
    %526 = vmatpush1.msra.mxu0 0.0
    %527 = vmatprep.subr.mxu0 0.0
    %528 = vmatpush1.msra.mxu0 %v308
    %529 = vmatprep.subr.mxu0 0.0
    %530 = vmatpush2.msra.mxu0 0.0
    %531 = vmatprep.subr.mxu0 0.0
    %532 = vmatpush2.msra.mxu0 0.0
    %533 = vmatprep.subr.mxu0 0.0
    %534 = vmatpush2.msra.mxu0 0.0
    %535 = vmatprep.subr.mxu0 0.0
    %536 = vmatpush2.msra.mxu0 0.0
    %537 = vmatprep.subr.mxu0 0.0
    %538 = vmatpush2.msra.mxu0 0.0
    %539 = vmatprep.subr.mxu0 0.0
    %540 = vmatpush2.msra.mxu0 0.0
    %541 = vmatprep.subr.mxu0 0.0
    %542 = vmatpush2.msra.mxu0 0.0
    %543 = vmatprep.subr.mxu0 0.0
    %544 = vmatpush2.msra.mxu0 0.0
    %545 = vmatprep.subr.mxu0 0.0
    %546 = vmatpush2.msra.mxu0 0.0
    %547 = vmatprep.subr.mxu0 0.0
    %548 = vmatpush2.msra.mxu0 0.0
    %549 = vmatprep.subr.mxu0 0.0
    %550 = vmatpush2.msra.mxu0 0.0
    %551 = vmatprep.subr.mxu0 0.0
    %552 = vmatpush2.msra.mxu0 0.0
    %553 = vmatprep.subr.mxu0 0.0
    %554 = vmatpush2.msra.mxu0 0.0
    %555 = vmatprep.subr.mxu0 0.0
    %556 = vmatpush2.msra.mxu0 0.0
    %557 = vmatprep.subr.mxu0 0.0
    %558 = vmatpush2.msra.mxu0 0.0
    %559 = vmatprep.subr.mxu0 0.0
    %560 = vmatpush2.msra.mxu0 0.0
    %561 = vmatprep.mubr.f32.mxu0 0.0
    %562 = vmatmul.mubr.f32.gmra.mxu0 %v495
    %v563 = vpop.f32.mrf.mxu0
    %v564 = vadd.f32 0.0, %v563
    %v565 = vpop.f32.mrf.mxu0
    %566 = vdwg.mxu0
    %v568 = vsel %vm471, %v493, 0
    %570 = vmatprep.subr.mxu0 0.0
    %571 = vmatpush1.msra.mxu0 0.0
    %572 = vmatprep.subr.mxu0 0.0
    %573 = vmatpush1.msra.mxu0 0.0
    %574 = vmatprep.subr.mxu0 0.0
    %575 = vmatpush1.msra.mxu0 0.0
    %576 = vmatprep.subr.mxu0 0.0
    %577 = vmatpush1.msra.mxu0 0.0
    %578 = vmatprep.subr.mxu0 0.0
    %579 = vmatpush1.msra.mxu0 0.0
    %580 = vmatprep.subr.mxu0 0.0
    %581 = vmatpush1.msra.mxu0 0.0
    %582 = vmatprep.subr.mxu0 0.0
    %583 = vmatpush1.msra.mxu0 0.0
    %584 = vmatprep.subr.mxu0 0.0
    %585 = vmatpush1.msra.mxu0 0.0
    %586 = vmatprep.subr.mxu0 0.0
    %587 = vmatpush1.msra.mxu0 0.0
    %588 = vmatprep.subr.mxu0 0.0
    %589 = vmatpush1.msra.mxu0 0.0
    %590 = vmatprep.subr.mxu0 0.0
    %591 = vmatpush1.msra.mxu0 0.0
    %592 = vmatprep.subr.mxu0 0.0
    %593 = vmatpush1.msra.mxu0 0.0
    %594 = vmatprep.subr.mxu0 0.0
    %595 = vmatpush1.msra.mxu0 0.0
    %596 = vmatprep.subr.mxu0 0.0
    %597 = vmatpush1.msra.mxu0 0.0
    %598 = vmatprep.subr.mxu0 0.0
    %599 = vmatpush1.msra.mxu0 0.0
    %600 = vmatprep.subr.mxu0 0.0
    %601 = vmatpush1.msra.mxu0 %v313
    %602 = vmatprep.subr.mxu0 0.0
    %603 = vmatpush2.msra.mxu0 0.0
    %604 = vmatprep.subr.mxu0 0.0
    %605 = vmatpush2.msra.mxu0 0.0
    %606 = vmatprep.subr.mxu0 0.0
    %607 = vmatpush2.msra.mxu0 0.0
    %608 = vmatprep.subr.mxu0 0.0
    %609 = vmatpush2.msra.mxu0 0.0
    %610 = vmatprep.subr.mxu0 0.0
    %611 = vmatpush2.msra.mxu0 0.0
    %612 = vmatprep.subr.mxu0 0.0
    %613 = vmatpush2.msra.mxu0 0.0
    %614 = vmatprep.subr.mxu0 0.0
    %615 = vmatpush2.msra.mxu0 0.0
    %616 = vmatprep.subr.mxu0 0.0
    %617 = vmatpush2.msra.mxu0 0.0
    %618 = vmatprep.subr.mxu0 0.0
    %619 = vmatpush2.msra.mxu0 0.0
    %620 = vmatprep.subr.mxu0 0.0
    %621 = vmatpush2.msra.mxu0 0.0
    %622 = vmatprep.subr.mxu0 0.0
    %623 = vmatpush2.msra.mxu0 0.0
    %624 = vmatprep.subr.mxu0 0.0
    %625 = vmatpush2.msra.mxu0 0.0
    %626 = vmatprep.subr.mxu0 0.0
    %627 = vmatpush2.msra.mxu0 0.0
    %628 = vmatprep.subr.mxu0 0.0
    %629 = vmatpush2.msra.mxu0 0.0
    %630 = vmatprep.subr.mxu0 0.0
    %631 = vmatpush2.msra.mxu0 0.0
    %632 = vmatprep.subr.mxu0 0.0
    %633 = vmatpush2.msra.mxu0 0.0
    %634 = vmatprep.mubr.f32.mxu0 0.0
    %635 = vmatmul.mubr.f32.gmra.mxu0 %v568
    %v636 = vpop.f32.mrf.mxu0
    %v637 = vadd.f32 0.0, %v636
    %v638 = vpop.f32.mrf.mxu0
    %639 = vdwg.mxu0
    %640 = vst.msk [vmem:[#allocation2] sm:$0xff] %vm318, %v564
    %641 = vst.msk [vmem:[#allocation2 + $0x8] sm:$0xff] %vm318, %v637
    // Predicated region
    $region38: #{tpu_custom_call.1} parent=1 // pred_check
      _
    $region39: #{tpu_custom_call.1} parent=1 // pred_check_branch
      %643 = sbr.rel (0) target = $region41
    $region40: #{tpu_custom_call.1} parent=1 // pred_region
      %s645 = ssub.s32 256, 256
      %646 = vsyncadd [#allocation3], %s645
      %s647 = sshll.u32 [#allocation2], 4
      %s648 = int_to_ptr.vmem [resolvable:$true] %s647
      %653 = dma.vmem_to_hbm [thread:$0]  %s648, 256, %s9, [#allocation3], 128, 128, 8
    $region41: #{tpu_custom_call.1} parent=1 // pred_fallthru
      _
    // Predicated region
    $region42: #{tpu_custom_call.1} parent=1 // pred_check
      _
    $region43: #{tpu_custom_call.1} parent=1 // pred_check_branch
      %655 = sbr.rel (0) target = $region45
    $region44: #{tpu_custom_call.1} parent=1 // pred_region
      %656 = dma.done [#allocation3], 256
    $region45: #{tpu_custom_call.1} parent=1 // pred_fallthru
      _
    %657 = vsyncpa [#allocation3], 1

</llo_original>
